<compile_context>
chip_gen: v7x
topology: tpu7x:2x2x1
jax: 0.10.0
libtpu: 0.0.40
codegen_flags: <defaults>
</compile_context>

<pallas_src>
import jax
import jax.numpy as jnp
import numpy as np
from jax.experimental import pallas as pl
from jax.experimental.pallas import tpu as pltpu

EPS = float(np.finfo(np.float32).eps)   # torch.finfo(torch.float32).eps
LANES = 128
_CHUNK_R = 128        # rows per inner sub-chunk: (128,128) f32 temps = 64 KiB
_SMALL_ROWS = 256     # below this, one full-array block / single "core"


def _round_up(x: int, m: int) -> int:
    return ((x + m - 1) // m) * m


def _tile_target_rows():
    """Per-generation row-tile target from physical VMEM capacity."""
    try:
        vmem_cap = int(pltpu.get_tpu_info().vmem_capacity_bytes)
    except Exception:           # conservative fallback if query unavailable
        vmem_cap = 64 << 20
    # 128 MiB parts (v5e/v6e): 16K rows (8 MiB f32 blocks).  64 MiB parts
    # (v7x, per core): 8K rows so 2x triple-buffered inputs stay ~< 28 MiB.
    tile_rows = 16384 if vmem_cap >= (100 << 20) else 8192
    return tile_rows, vmem_cap


def _make_kernel(rows_valid: int, tile_r: int, steps_per_core: int, chunk_r: int):
    """Kernel with the valid row count / tiling baked in as Python ints."""
    n_chunks = tile_r // chunk_r

    def kernel(yp_ref, yt_ref, m_ref, out_ref, acc_ref):
        c = pl.program_id(0)                 # core (parallel on v7x)
        i = pl.program_id(1)                 # step within this core (arbitrary)

        @pl.when(i == 0)
        def _():
            acc_ref[...] = jnp.zeros_like(acc_ref)

        # Absolute first row of this (unclamped) block.  Rows at/after
        # rows_valid (block overhang, or fully-overhanging clamped blocks)
        # contribute zero via the per-chunk mask below; for interior blocks
        # the compare/select is a semantic no-op with plenty of VPU slack.
        block_row0 = (c * steps_per_core + i) * tile_r
        row_limit = rows_valid - block_row0          # may be <= 0 or > tile_r

        row_iota = jax.lax.broadcasted_iota(jnp.int32, (chunk_r, LANES), 0)

        def chunk_body(k, carry):
            r0 = pl.multiple_of(k * chunk_r, chunk_r)
            valid = (row_iota + r0) < row_limit
            yp = yp_ref[pl.ds(r0, chunk_r), :].astype(jnp.float32)
            yt = yt_ref[pl.ds(r0, chunk_r), :].astype(jnp.float32)
            mm = m_ref[pl.ds(r0, chunk_r), :].astype(jnp.float32)
            d = yt - yp
            se = jnp.where(valid, d * d * mm, 0.0)   # mask se so NaN/garbage
            mv = jnp.where(valid, mm, 0.0)           # rows never reach the sums
            # (chunk_r,128) -> (8,128): regroups whole vregs -> pure VPU adds.
            acc_ref[0] += jnp.sum(se.reshape(chunk_r // 8, 8, LANES), axis=0)
            acc_ref[1] += jnp.sum(mv.reshape(chunk_r // 8, 8, LANES), axis=0)
            return carry

        jax.lax.fori_loop(0, n_chunks, chunk_body, 0)

        @pl.when(i == steps_per_core - 1)
        def _():
            # Per-core partial sums; final combine + divide happens in JAX.
            out_ref[0, 0] = jnp.sum(acc_ref[0])
            out_ref[0, 1] = jnp.sum(acc_ref[1])

    return kernel


@jax.jit
def masked_mse(y_pred, y_true, binary_mask):
    """Pallas masked MSE matching the PyTorch MaskedMSE.forward semantics."""
    yp = y_pred.reshape(-1)
    yt = y_true.reshape(-1)
    m = binary_mask.reshape(-1)
    if m.dtype == jnp.bool_:
        # TODO(synk): feed the bool mask straight into the kernel once i1 refs
        # are unconditionally supported; int8 keeps the HBM stream at 1 B/elem.
        m = m.astype(jnp.int8)

    n = yp.shape[0]
    align = 32 if m.dtype.itemsize == 1 else 8     # int8/bool sublane packing
    rows_k = (n // LANES // align) * align         # rows handled by the kernel
    n_k = rows_k * LANES

    def _jnp_sums(a, b, mk):
        a32 = a.astype(jnp.float32)
        b32 = b.astype(jnp.float32)
        mk32 = mk.astype(jnp.float32)
        return jnp.sum((b32 - a32) ** 2 * mk32), jnp.sum(mk32)

    if rows_k == 0:
        # Degenerate tiny input: pure jnp.
        sum_se, sum_m = _jnp_sums(yp, yt, m)
        return sum_se / (sum_m + EPS)

    if n_k == n:
        yp_k, yt_k, m_k = yp, yt, m                # reshape below is a bitcast
        tail_se = tail_m = None
    else:
        # Rare ragged tail (< align*128 + 127 elems): tiny jnp epilogue instead
        # of padding (and therefore re-copying) all three inputs.
        tail_se, tail_m = _jnp_sums(yp[n_k:], yt[n_k:], m[n_k:])
        yp_k, yt_k, m_k = yp[:n_k], yt[:n_k], m[:n_k]

    yp_k = yp_k.reshape(rows_k, LANES)
    yt_k = yt_k.reshape(rows_k, LANES)
    m_k = m_k.reshape(rows_k, LANES)

    tile_target, vmem_cap = _tile_target_rows()
    if rows_k < _SMALL_ROWS:
        num_cores, tile_r = 1, rows_k              # one block, full array dims
    else:
        num_cores = 2                              # one per TensorCore on v7x
        tile_r = min(tile_target,
                     _round_up(pl.cdiv(rows_k, num_cores), _CHUNK_R))
    chunk_r = _CHUNK_R if tile_r % _CHUNK_R == 0 else tile_r
    steps_per_core = pl.cdiv(rows_k, num_cores * tile_r)
    nblocks = pl.cdiv(rows_k, tile_r)

    # Clamp so every requested block index stays in range; fully-overhanging
    # blocks re-read the last real block and are zeroed by the in-kernel mask.
    def in_map(c, i):
        return (jnp.minimum(c * steps_per_core + i, nblocks - 1), 0)

    tile_spec = pl.BlockSpec((tile_r, LANES), in_map)

    bytes_per_elem = (yp_k.dtype.itemsize + yt_k.dtype.itemsize
                      + m_k.dtype.itemsize)
    tile_bytes = tile_r * LANES * bytes_per_elem
    vmem_limit = 2 * tile_bytes + (4 << 20)        # double-buffered inputs + slack
    vmem_limit = int(min(max(vmem_limit, 16 << 20),
                         max(32 << 20, (3 * vmem_cap) // 4)))

    partials = pl.pallas_call(
        _make_kernel(rows_k, tile_r, steps_per_core, chunk_r),
        out_shape=jax.ShapeDtypeStruct((num_cores, 2), jnp.float32),
        grid_spec=pltpu.PrefetchScalarGridSpec(
            num_scalar_prefetch=0,
            grid=(num_cores, steps_per_core),
            in_specs=[tile_spec, tile_spec, tile_spec],
            out_specs=pl.BlockSpec((1, 2), lambda c, i: (c, 0),
                                   memory_space=pltpu.SMEM),
            scratch_shapes=[pltpu.VMEM((2, 8, LANES), jnp.float32)],
        ),
        compiler_params=pltpu.CompilerParams(
            dimension_semantics=("parallel", "arbitrary"),
            vmem_limit_bytes=vmem_limit,
        ),
        cost_estimate=pl.CostEstimate(
            flops=5 * rows_k * LANES,
            transcendentals=0,
            bytes_accessed=rows_k * LANES * bytes_per_elem + num_cores * 2 * 4,
        ),
    )(yp_k, yt_k, m_k)

    sum_se = jnp.sum(partials[:, 0])
    sum_m = jnp.sum(partials[:, 1])
    if tail_se is not None:
        sum_se = sum_se + tail_se
        sum_m = sum_m + tail_m
    return sum_se / (sum_m + EPS)


def _reference(y_pred, y_true, binary_mask):
    se = (y_true.astype(jnp.float32) - y_pred.astype(jnp.float32)) ** 2
    mse = se * binary_mask.astype(jnp.float32)
    return mse.sum() / (binary_mask.astype(jnp.float32).sum() + EPS)


if __name__ == "__main__":
    key = jax.random.PRNGKey(0)

    # 1) Small NCHW-like shape, f32 mask (single-block path).
    k1, k2, k3, key = jax.random.split(key, 4)
    shape = (2, 4, 16, 16)
    y_pred = jax.random.normal(k1, shape, dtype=jnp.float32)
    y_true = jax.random.normal(k2, shape, dtype=jnp.float32)
    mask = (jax.random.uniform(k3, shape) > 0.5).astype(jnp.float32)
    loss = jax.block_until_ready(masked_mse(y_pred, y_true, mask))
    np.testing.assert_allclose(np.asarray(loss),
                               np.asarray(_reference(y_pred, y_true, mask)),
                               rtol=1e-5, atol=1e-6)

    # 2) Bool mask (int8 HBM stream) + ragged tail handled by the jnp epilogue.
    k1, k2, k3, key = jax.random.split(key, 4)
    shape2 = (3, 5, 33, 37)                      # 18315 elems -> 128-row kernel + tail
    y_pred2 = jax.random.normal(k1, shape2, dtype=jnp.float32)
    y_true2 = jax.random.normal(k2, shape2, dtype=jnp.float32)
    mask2 = jax.random.uniform(k3, shape2) > 0.5  # bool
    loss2 = jax.block_until_ready(masked_mse(y_pred2, y_true2, mask2))
    np.testing.assert_allclose(np.asarray(loss2),
                               np.asarray(_reference(y_pred2, y_true2, mask2)),
                               rtol=1e-5, atol=1e-6)

    # 3) Larger input exercising the two-core parallel grid axis.
    k1, k2, k3, key = jax.random.split(key, 4)
    shape3 = (4, 8, 128, 128)                    # 524288 elems -> grid (2, steps)
    y_pred3 = jax.random.normal(k1, shape3, dtype=jnp.float32)
    y_true3 = jax.random.normal(k2, shape3, dtype=jnp.float32)
    mask3 = (jax.random.uniform(k3, shape3) > 0.5).astype(jnp.float32)
    loss3 = jax.block_until_ready(masked_mse(y_pred3, y_true3, mask3))
    np.testing.assert_allclose(np.asarray(loss3),
                               np.asarray(_reference(y_pred3, y_true3, mask3)),
                               rtol=1e-5, atol=1e-6)

    print("KERNEL_OK")
</pallas_src>

<mosaic_0001>
module attributes {stable_mosaic.version = 11 : i64} {
  func.func @kernel(%arg0: i32, %arg1: i32, %arg2: memref<16x128xf32, #tpu.memory_space<vmem>>, %arg3: memref<16x128xf32, #tpu.memory_space<vmem>>, %arg4: memref<16x128xf32, #tpu.memory_space<vmem>>, %arg5: memref<1x2xf32, #tpu.memory_space<smem>>, %arg6: memref<2x8x128xf32, #tpu.memory_space<vmem>>) attributes {dimension_semantics = [#tpu.dimension_semantics<parallel>, #tpu.dimension_semantics<arbitrary>], iteration_bounds = array<i64: 1, 1>, scalar_prefetch = 0 : i64, scratch_operands = 1 : i64, tpu.core_type = #tpu.core_type<tc>, window_params = [{transform_indices = @transform_0, window_bounds = array<i64: 16, 128>}, {transform_indices = @transform_1, window_bounds = array<i64: 16, 128>}, {transform_indices = @transform_2, window_bounds = array<i64: 16, 128>}, {transform_indices = @transform_3, window_bounds = array<i64: 1, 2>}]} {
    %c0_i32 = arith.constant 0 : i32
    %0 = arith.cmpi eq, %arg1, %c0_i32 : i32
    %1 = arith.extui %0 : i1 to i32
    %c0_i32_0 = arith.constant 0 : i32
    %2 = arith.cmpi ne, %1, %c0_i32_0 : i32
    scf.if %2 {
      %cst_23 = arith.constant 0.000000e+00 : f32
      %46 = vector.broadcast %cst_23 : f32 to vector<2x8x128xf32>
      %c0_24 = arith.constant 0 : index
      %c0_25 = arith.constant 0 : index
      %c0_26 = arith.constant 0 : index
      %47 = vector.load %arg6[%c0_24, %c0_25, %c0_26] : memref<2x8x128xf32, #tpu.memory_space<vmem>>, vector<2x8x128xf32>
      tpu.vector_store %arg6[%c0_24, %c0_25, %c0_26], %46 {strides = array<i32>} : memref<2x8x128xf32, #tpu.memory_space<vmem>>, vector<2x8x128xf32>,
    } else {
    }
    %c1_i32 = arith.constant 1 : i32
    %3 = arith.muli %arg0, %c1_i32 : i32
    %4 = arith.addi %3, %arg1 : i32
    %c16_i32 = arith.constant 16 : i32
    %5 = arith.muli %4, %c16_i32 : i32
    %c16_i32_1 = arith.constant 16 : i32
    %6 = arith.subi %c16_i32_1, %5 : i32
    %7 = tpu.iota {dimensions = array<i32: 0>} : vector<16x128xi32>
    %c0_i32_2 = arith.constant 0 : i32
    %c16_i32_3 = arith.constant 16 : i32
    %8 = arith.muli %c0_i32_2, %c16_i32_3 : i32
    %9 = tpu.assume_multiple %8, 16 : i32
    %10 = vector.broadcast %9 : i32 to vector<16x128xi32>
    %11 = arith.addi %7, %10 : vector<16x128xi32>
    %12 = vector.broadcast %6 : i32 to vector<16x128xi32>
    %13 = arith.cmpi slt, %11, %12 : vector<16x128xi32>
    %14 = arith.index_cast %9 : i32 to index
    %c0 = arith.constant 0 : index
    %15 = vector.load %arg2[%14, %c0] : memref<16x128xf32, #tpu.memory_space<vmem>>, vector<16x128xf32>
    %16 = arith.index_cast %9 : i32 to index
    %c0_4 = arith.constant 0 : index
    %17 = vector.load %arg3[%16, %c0_4] : memref<16x128xf32, #tpu.memory_space<vmem>>, vector<16x128xf32>
    %18 = arith.index_cast %9 : i32 to index
    %c0_5 = arith.constant 0 : index
    %19 = vector.load %arg4[%18, %c0_5] : memref<16x128xf32, #tpu.memory_space<vmem>>, vector<16x128xf32>
    %20 = arith.subf %17, %15 : vector<16x128xf32>
    %21 = arith.mulf %20, %20 : vector<16x128xf32>
    %22 = arith.mulf %21, %19 : vector<16x128xf32>
    %cst = arith.constant 0.000000e+00 : f32
    %23 = vector.broadcast %cst : f32 to vector<16x128xf32>
    %24 = arith.select %13, %22, %23 : vector<16x128xi1>, vector<16x128xf32>
    %cst_6 = arith.constant 0.000000e+00 : f32
    %25 = vector.broadcast %cst_6 : f32 to vector<16x128xf32>
    %26 = arith.select %13, %19, %25 : vector<16x128xi1>, vector<16x128xf32>
    %c0_7 = arith.constant 0 : index
    %c0_8 = arith.constant 0 : index
    %c0_9 = arith.constant 0 : index
    %27 = vector.load %arg6[%c0_7, %c0_8, %c0_9] : memref<2x8x128xf32, #tpu.memory_space<vmem>>, vector<1x8x128xf32>
    %28 = vector.shape_cast %27 : vector<1x8x128xf32> to vector<8x128xf32>
    %29 = vector.shape_cast %24 : vector<16x128xf32> to vector<2x8x128xf32>
    %cst_10 = arith.constant dense<0.000000e+00> : vector<8x128xf32>
    %30 = vector.multi_reduction <add>, %29, %cst_10 [0] : vector<2x8x128xf32> to vector<8x128xf32>
    %31 = arith.addf %28, %30 : vector<8x128xf32>
    %c0_11 = arith.constant 0 : index
    %c0_12 = arith.constant 0 : index
    %c0_13 = arith.constant 0 : index
    %32 = vector.load %arg6[%c0_11, %c0_12, %c0_13] : memref<2x8x128xf32, #tpu.memory_space<vmem>>, vector<1x8x128xf32>
    %33 = vector.shape_cast %32 : vector<1x8x128xf32> to vector<8x128xf32>
    %34 = vector.shape_cast %31 : vector<8x128xf32> to vector<1x8x128xf32>
    tpu.vector_store %arg6[%c0_11, %c0_12, %c0_13], %34 {strides = array<i32>} : memref<2x8x128xf32, #tpu.memory_space<vmem>>, vector<1x8x128xf32>,
    %c1 = arith.constant 1 : index
    %c0_14 = arith.constant 0 : index
    %c0_15 = arith.constant 0 : index
    %35 = vector.load %arg6[%c1, %c0_14, %c0_15] : memref<2x8x128xf32, #tpu.memory_space<vmem>>, vector<1x8x128xf32>
    %36 = vector.shape_cast %35 : vector<1x8x128xf32> to vector<8x128xf32>
    %37 = vector.shape_cast %26 : vector<16x128xf32> to vector<2x8x128xf32>
    %cst_16 = arith.constant dense<0.000000e+00> : vector<8x128xf32>
    %38 = vector.multi_reduction <add>, %37, %cst_16 [0] : vector<2x8x128xf32> to vector<8x128xf32>
    %39 = arith.addf %36, %38 : vector<8x128xf32>
    %c1_17 = arith.constant 1 : index
    %c0_18 = arith.constant 0 : index
    %c0_19 = arith.constant 0 : index
    %40 = vector.load %arg6[%c1_17, %c0_18, %c0_19] : memref<2x8x128xf32, #tpu.memory_space<vmem>>, vector<1x8x128xf32>
    %41 = vector.shape_cast %40 : vector<1x8x128xf32> to vector<8x128xf32>
    %42 = vector.shape_cast %39 : vector<8x128xf32> to vector<1x8x128xf32>
    tpu.vector_store %arg6[%c1_17, %c0_18, %c0_19], %42 {strides = array<i32>} : memref<2x8x128xf32, #tpu.memory_space<vmem>>, vector<1x8x128xf32>,
    %c1_i32_20 = arith.constant 1 : i32
    %c0_i32_21 = arith.constant 0 : i32
    %43 = arith.cmpi eq, %arg1, %c0_i32_21 : i32
    %44 = arith.extui %43 : i1 to i32
    %c0_i32_22 = arith.constant 0 : i32
    %45 = arith.cmpi ne, %44, %c0_i32_22 : i32
    scf.if %45 {
      %c0_23 = arith.constant 0 : index
      %c0_24 = arith.constant 0 : index
      %c0_25 = arith.constant 0 : index
      %46 = vector.load %arg6[%c0_23, %c0_24, %c0_25] : memref<2x8x128xf32, #tpu.memory_space<vmem>>, vector<1x8x128xf32>
      %47 = vector.shape_cast %46 : vector<1x8x128xf32> to vector<8x128xf32>
      %48 = vector.shape_cast %47 : vector<8x128xf32> to vector<1x8x128xf32>
      %cst_26 = arith.constant dense<0.000000e+00> : vector<1xf32>
      %49 = vector.multi_reduction <add>, %48, %cst_26 [1, 2] : vector<1x8x128xf32> to vector<1xf32>
      %50 = vector.shape_cast %49 : vector<1xf32> to vector<1x1x1xf32>
      %51 = vector.extract %50[0, 0, 0] : f32 from vector<1x1x1xf32>
      %c0_27 = arith.constant 0 : index
      %c0_28 = arith.constant 0 : index
      %52 = memref.load %arg5[%c0_27, %c0_28] : memref<1x2xf32, #tpu.memory_space<smem>>
      memref.store %51, %arg5[%c0_27, %c0_28] : memref<1x2xf32, #tpu.memory_space<smem>>
      %c1_29 = arith.constant 1 : index
      %c0_30 = arith.constant 0 : index
      %c0_31 = arith.constant 0 : index
      %53 = vector.load %arg6[%c1_29, %c0_30, %c0_31] : memref<2x8x128xf32, #tpu.memory_space<vmem>>, vector<1x8x128xf32>
      %54 = vector.shape_cast %53 : vector<1x8x128xf32> to vector<8x128xf32>
      %55 = vector.shape_cast %54 : vector<8x128xf32> to vector<1x8x128xf32>
      %cst_32 = arith.constant dense<0.000000e+00> : vector<1xf32>
      %56 = vector.multi_reduction <add>, %55, %cst_32 [1, 2] : vector<1x8x128xf32> to vector<1xf32>
      %57 = vector.shape_cast %56 : vector<1xf32> to vector<1x1x1xf32>
      %58 = vector.extract %57[0, 0, 0] : f32 from vector<1x1x1xf32>
      %c0_33 = arith.constant 0 : index
      %c1_34 = arith.constant 1 : index
      %59 = memref.load %arg5[%c0_33, %c1_34] : memref<1x2xf32, #tpu.memory_space<smem>>
      memref.store %58, %arg5[%c0_33, %c1_34] : memref<1x2xf32, #tpu.memory_space<smem>>
    } else {
    }
    return
  }
  func.func @transform_0(%arg0: i32, %arg1: i32) -> (i32, i32) {
    %c1_i32 = arith.constant 1 : i32
    %0 = arith.muli %arg0, %c1_i32 : i32
    %1 = arith.addi %0, %arg1 : i32
    %c0_i32 = arith.constant 0 : i32
    %2 = arith.minsi %1, %c0_i32 : i32
    %c0_i32_0 = arith.constant 0 : i32
    %c0_i32_1 = arith.constant 0 : i32
    return %2, %c0_i32_0 : i32, i32
  }
  func.func @transform_1(%arg0: i32, %arg1: i32) -> (i32, i32) {
    %c1_i32 = arith.constant 1 : i32
    %0 = arith.muli %arg0, %c1_i32 : i32
    %1 = arith.addi %0, %arg1 : i32
    %c0_i32 = arith.constant 0 : i32
    %2 = arith.minsi %1, %c0_i32 : i32
    %c0_i32_0 = arith.constant 0 : i32
    %c0_i32_1 = arith.constant 0 : i32
    return %2, %c0_i32_0 : i32, i32
  }
  func.func @transform_2(%arg0: i32, %arg1: i32) -> (i32, i32) {
    %c1_i32 = arith.constant 1 : i32
    %0 = arith.muli %arg0, %c1_i32 : i32
    %1 = arith.addi %0, %arg1 : i32
    %c0_i32 = arith.constant 0 : i32
    %2 = arith.minsi %1, %c0_i32 : i32
    %c0_i32_0 = arith.constant 0 : i32
    %c0_i32_1 = arith.constant 0 : i32
    return %2, %c0_i32_0 : i32, i32
  }
  func.func @transform_3(%arg0: i32, %arg1: i32) -> (i32, i32) {
    %c0_i32 = arith.constant 0 : i32
    %c0_i32_0 = arith.constant 0 : i32
    return %arg0, %c0_i32 : i32, i32
  }
}

</mosaic_0001>

<llo_original>
// kernel: masked_mse.1
$region0: #{masked_mse.1}
  #allocation0 [shape = 'u32[]', space=smem, size = 0x4, offset = 0x4, fixed_abs, tag = 'smem constant byte address 0x4 - core index']
  #allocation1 [shape = 'u32[144,128]{1,0:T(1,128)}', space=vmem, size = 0x12000, scoped, tag = 'internal scratch']
  #allocation2 [shape = 'f32[2,8,128]{2,1,0:T(8,128)}', space=vmem, size = 0x2000, scoped, tag = 'scratch operand']
  %s0 = inlined_call_operand.vmem [shape: f32[16,128], index: 0, kind: input, shape index: {}]
  %s1 = inlined_call_operand.vmem [shape: f32[16,128], index: 1, kind: input, shape index: {}]
  %s2 = inlined_call_operand.vmem [shape: f32[16,128], index: 2, kind: input, shape index: {}]
  %s3 = inlined_call_operand.vmem [shape: f32[1,2], index: 3, kind: output, shape index: {}]
  %s4 = sld [smem:[#allocation0]]
  $region30: #{masked_mse.1} parent=0
    _
  %s6 = ssub.s32 1, %s4
  %s7 = scalar_select 0, %s6, %s4
  $region1: #{masked_mse.1} parent=0
    #allocation3 [shape = 'u8[512]{0}', space=smem, size = 0x200, scoped, tag = 'output window, operand 0, single buffered']
    #allocation4 [shape = 's32[1]{0}', space=sflag, size = 0x4, scoped, tag = 'scoped memory for masked_mse.1']
    %8 = vsyncpa [#allocation4], 0
    // Predicated region
    $region2: #{masked_mse.1} parent=1 // pred_check
      _
    $region3: #{masked_mse.1} parent=1 // pred_check_branch
      %10 = sbr.rel (0) target = $region5
    $region4: #{masked_mse.1} parent=1 // pred_region
      %s11 = sadd.s32 0, 0
      %p12 = scmp.lt.s32.totalorder %s11, 0
      %s13 = scalar_select %p12, %s11, 0
      %s14 = smul.u32 2, %s13
      %p15 = scmp.lt.s32.totalorder %s14, 1
      %s16 = scalar_select %p15, %s14, 1
      %s17 = smul.addr %s16, 8
      %s18 = scalar_lea.vmem %s0, %s17
      %s19 = sadd.s32 0, 0
      %p20 = scmp.lt.s32.totalorder %s19, 0
      %s21 = scalar_select %p20, %s19, 0
      %s22 = smul.u32 2, %s21
    $region5: #{masked_mse.1} parent=1 // pred_fallthru
      _
    // Predicated region
    $region6: #{masked_mse.1} parent=1 // pred_check
      _
    $region7: #{masked_mse.1} parent=1 // pred_check_branch
      %24 = sbr.rel (0) target = $region9
    $region8: #{masked_mse.1} parent=1 // pred_region
      %s25 = sadd.s32 0, 0
      %p26 = scmp.lt.s32.totalorder %s25, 0
      %s27 = scalar_select %p26, %s25, 0
      %s28 = smul.u32 2, %s27
      %p29 = scmp.lt.s32.totalorder %s28, 1
      %s30 = scalar_select %p29, %s28, 1
      %s31 = smul.addr %s30, 8
      %s32 = scalar_lea.vmem %s1, %s31
      %s33 = sadd.s32 0, 0
      %p34 = scmp.lt.s32.totalorder %s33, 0
      %s35 = scalar_select %p34, %s33, 0
      %s36 = smul.u32 2, %s35
    $region9: #{masked_mse.1} parent=1 // pred_fallthru
      _
    // Predicated region
    $region10: #{masked_mse.1} parent=1 // pred_check
      _
    $region11: #{masked_mse.1} parent=1 // pred_check_branch
      %38 = sbr.rel (0) target = $region13
    $region12: #{masked_mse.1} parent=1 // pred_region
      %s39 = sadd.s32 0, 0
      %p40 = scmp.lt.s32.totalorder %s39, 0
      %s41 = scalar_select %p40, %s39, 0
      %s42 = smul.u32 2, %s41
      %p43 = scmp.lt.s32.totalorder %s42, 1
      %s44 = scalar_select %p43, %s42, 1
      %s45 = smul.addr %s44, 8
      %s46 = scalar_lea.vmem %s2, %s45
      %s47 = sadd.s32 0, 0
      %p48 = scmp.lt.s32.totalorder %s47, 0
      %s49 = scalar_select %p48, %s47, 0
      %s50 = smul.u32 2, %s49
    $region13: #{masked_mse.1} parent=1 // pred_fallthru
      _
    %s51 = sadd.s32 0, 0
    %p52 = scmp.lt.s32.totalorder %s51, 0
    %s53 = scalar_select %p52, %s51, 0
    %s54 = smul.u32 2, %s53
    %p55 = scmp.lt.s32.totalorder %s54, 1
    %s56 = scalar_select %p55, %s54, 1
    %s57 = smul.addr %s56, 8
    %s58 = scalar_lea.vmem %s0, %s57
    %s59 = sadd.s32 0, 0
    %p60 = scmp.lt.s32.totalorder %s59, 0
    %s61 = scalar_select %p60, %s59, 0
    %s62 = smul.u32 2, %s61
    %p63 = scmp.lt.s32.totalorder %s62, 1
    %s64 = scalar_select %p63, %s62, 1
    %s65 = smul.addr %s64, 8
    %s66 = scalar_lea.vmem %s1, %s65
    %s67 = sadd.s32 0, 0
    %p68 = scmp.lt.s32.totalorder %s67, 0
    %s69 = scalar_select %p68, %s67, 0
    %s70 = smul.u32 2, %s69
    %p71 = scmp.lt.s32.totalorder %s70, 1
    %s72 = scalar_select %p71, %s70, 1
    %s73 = smul.addr %s72, 8
    %s74 = scalar_lea.vmem %s2, %s73
    %s75 = sadd.s32 0, 0
    %p76 = scmp.lt.s32.totalorder %s75, 0
    %s77 = scalar_select %p76, %s75, 0
    %s78 = smul.u32 2, %s77
    %p79 = scmp.lt.s32.totalorder %s78, 1
    %s80 = scalar_select %p79, %s78, 1
    %s81 = smul.addr %s80, 8
    %s82 = scalar_lea.vmem %s0, %s81
    %s83 = sadd.s32 0, 0
    %p84 = scmp.lt.s32.totalorder %s83, 0
    %s85 = scalar_select %p84, %s83, 0
    %s86 = smul.u32 2, %s85
    %s87 = sadd.s32 0, 0
    %p88 = scmp.lt.s32.totalorder %s87, 0
    %s89 = scalar_select %p88, %s87, 0
    %s90 = smul.u32 2, %s89
    %p91 = scmp.lt.s32.totalorder %s90, 1
    %s92 = scalar_select %p91, %s90, 1
    %s93 = smul.addr %s92, 8
    %s94 = scalar_lea.vmem %s1, %s93
    %s95 = sadd.s32 0, 0
    %p96 = scmp.lt.s32.totalorder %s95, 0
    %s97 = scalar_select %p96, %s95, 0
    %s98 = smul.u32 2, %s97
    %s99 = sadd.s32 0, 0
    %p100 = scmp.lt.s32.totalorder %s99, 0
    %s101 = scalar_select %p100, %s99, 0
    %s102 = smul.u32 2, %s101
    %p103 = scmp.lt.s32.totalorder %s102, 1
    %s104 = scalar_select %p103, %s102, 1
    %s105 = smul.addr %s104, 8
    %s106 = scalar_lea.vmem %s2, %s105
    %s107 = sadd.s32 0, 0
    %p108 = scmp.lt.s32.totalorder %s107, 0
    %s109 = scalar_select %p108, %s107, 0
    %s110 = smul.u32 2, %s109
    %p111 = scmp.eq.s32.totalorder 0, 0
    // Predicated region
    $region14: #{masked_mse.1} parent=1 // pred_check
      %p112 = pneg %p111
    $region15: #{masked_mse.1} parent=1 // pred_check_branch
      %114 = sbr.rel (%p112) target = $region17
    $region16: #{masked_mse.1} parent=1 // pred_region
      %115 = vst [vmem:[#allocation2] sm:$0xff] 0.0
      %116 = vst [vmem:[#allocation2 + $0x8] sm:$0xff] 0.0
    $region17: #{masked_mse.1} parent=1 // pred_fallthru
      _
    %s117 = sadd.s32 0, 0
    %s118 = smul.u32 %s117, 16
    %s119 = ssub.s32 16, %s118
    %v120 = vlaneseq
    %v121 = vshrl.u32 %v120, 7
    %v122 = vadd.s32 %v121, 8
    %v123 = vstv 0
    %v124 = vadd.s32 %v121, %v123
    %v125 = vadd.s32 %v122, %v123
    %v126 = vstv %s119
    %vm127 = vcmp.lt.s32.totalorder %v124, %v126
    %vm128 = vcmp.lt.s32.totalorder %v125, %v126
    %v129 = vld [vmem:[%s82] sm:$0xff]
    %v130 = vld [vmem:[%s82 + $0x8] sm:$0xff]
    %v131 = vld [vmem:[%s94] sm:$0xff]
    %v132 = vld [vmem:[%s94 + $0x8] sm:$0xff]
    %v133 = vld [vmem:[%s106] sm:$0xff]
    %v134 = vld [vmem:[%s106 + $0x8] sm:$0xff]
    %v135 = vsub.f32 %v131, %v129
    %v136 = vsub.f32 %v132, %v130
    %v137 = vmul.f32 %v135, %v135
    %v138 = vmul.f32 %v136, %v136
    %v139 = vmul.f32 %v137, %v133
    %v140 = vmul.f32 %v138, %v134
    %v141 = vsel %vm127, %v139, 0.0
    %v142 = vsel %vm128, %v140, 0.0
    %v143 = vsel %vm127, %v133, 0.0
    %v144 = vsel %vm128, %v134, 0.0
    %v145 = vld [vmem:[#allocation2] sm:$0xff]
    %v146 = vadd.f32 %v141, %v142
    %v147 = vadd.f32 %v145, %v146
    %148 = vst [vmem:[#allocation2] sm:$0xff] %v147
    %s149 = scalar_lea.vmem [#allocation2], 8
    %v150 = vld [vmem:[%s149] sm:$0xff]
    %v151 = vadd.f32 %v143, %v144
    %v152 = vadd.f32 %v150, %v151
    %153 = vst [vmem:[%s149] sm:$0xff] %v152
    // Predicated region
    $region18: #{masked_mse.1} parent=1 // pred_check
      %p154 = pneg %p111
    $region19: #{masked_mse.1} parent=1 // pred_check_branch
      %156 = sbr.rel (%p154) target = $region21
    $region20: #{masked_mse.1} parent=1 // pred_region
      %v157 = vld [vmem:[#allocation2] sm:$0xff]
      %158 = vadd.xlane.f32.xlu0 %v157
      %v159 = vpop.xlane.xlu0 %158
      %v160 = vrot.slane %v159, 4
      %v161 = vadd.f32 %v159, %v160
      %v162 = vrot.slane %v161, 2
      %v163 = vadd.f32 %v161, %v162
      %v164 = vrot.slane %v163, 1
      %v165 = vadd.f32 %v163, %v164
      %s166 = vtos %v165
      %s167 = scalar_lea.smem [#allocation3], 0
      %168 = sst [smem:[%s167]] %s166
      %v169 = vld [vmem:[%s149] sm:$0xff]
      %170 = vadd.xlane.f32.xlu0 %v169
      %v171 = vpop.xlane.xlu0 %170
      %v172 = vrot.slane %v171, 4
      %v173 = vadd.f32 %v171, %v172
      %v174 = vrot.slane %v173, 2
      %v175 = vadd.f32 %v173, %v174
      %v176 = vrot.slane %v175, 1
      %v177 = vadd.f32 %v175, %v176
      %s178 = vtos %v177
      %s179 = scalar_lea.smem [#allocation3], 1
      %180 = sst [smem:[%s179]] %s178
    $region21: #{masked_mse.1} parent=1 // pred_fallthru
      _
    // Predicated region
    $region22: #{masked_mse.1} parent=1 // pred_check
      _
    $region23: #{masked_mse.1} parent=1 // pred_check_branch
      %182 = sbr.rel (0) target = $region25
    $region24: #{masked_mse.1} parent=1 // pred_region
      %s184 = ssub.s32 16, 16
      %185 = vsyncadd [#allocation4], %s184
      %s187 = sshll.u32 %s3, 4
      %s188 = int_to_ptr.vmem [resolvable:$true] %s187
      %190 = dma.smem_to_vmem [#allocation3], 16, %s188, [#allocation4]
    $region25: #{masked_mse.1} parent=1 // pred_fallthru
      _
    // Predicated region
    $region26: #{masked_mse.1} parent=1 // pred_check
      _
    $region27: #{masked_mse.1} parent=1 // pred_check_branch
      %192 = sbr.rel (0) target = $region29
    $region28: #{masked_mse.1} parent=1 // pred_region
      %193 = dma.done [#allocation4], 16
    $region29: #{masked_mse.1} parent=1 // pred_fallthru
      _
    %194 = sfence
    %195 = vsyncpa [#allocation4], 1

</llo_original>
